<compile_context>
chip_gen: v6e
topology: v6e:2x2x1
jax: 0.10.0
libtpu: 0.0.40
codegen_flags: <defaults>
</compile_context>

<pallas_src>
import functools

import jax
import jax.numpy as jnp
from jax.experimental import pallas as pl
from jax.experimental.pallas import tpu as pltpu


LANE = 128                      # lane width: internal rank padding only
_VMEM_TILE_BUDGET = 32 << 20    # per-step working set target (fits v7x 64 MiB)
_VMEM_LIMIT_CAP = 56 << 20      # never request more scoped VMEM than v7x has


def _round_up(x, m):
    return ((x + m - 1) // m) * m


# ---------------------------------------------------------------------------
# Pallas kernel: fused CP-sparse polynomial recursion + final projection.
# ---------------------------------------------------------------------------
def _cp_kernel(z_ref, w_ref, c_ref, b_ref, o_ref, *, degree, kp):
    # One fused MXU push for all `degree` masked projections -> (tm, degree*kp).
    p = jnp.dot(z_ref[...], w_ref[...], preferred_element_type=jnp.float32)

    # out = z @ W1^T  (first 128-aligned slice; padded lanes k..kp are zero).
    out = p[:, :kp]

    # out = (z @ Wi^T) * out + out  ==  out * (p_i + 1)   for i = 2 .. degree.
    # Padded lanes stay zero: 0 * (0 + 1) = 0.
    # TODO(synk): if a bundle dump post-HBM-fixes shows VALU / vld-vst as the
    # binding slot, fold the +1 into the fused matmul (constant-1 z column)
    # and/or sub-tile this loop over 128-row chunks of the block.
    for i in range(1, degree):
        out = out * (p[:, i * kp:(i + 1) * kp] + 1.0)

    # layer_C: lane-exact (tm, o) result -> masked vst into a narrow tile, but
    # far fewer HBM bytes than a 128-lane-padded slab.
    y = jnp.dot(out.astype(c_ref.dtype), c_ref[...],
                preferred_element_type=jnp.float32)
    y = y + b_ref[...]
    o_ref[...] = y.astype(o_ref.dtype)


# ---------------------------------------------------------------------------
# Tile selection / VMEM budgeting.
# ---------------------------------------------------------------------------
def _vmem_estimate(tm, d, kp, degree, o, in_isz, out_isz):
    z_bufs = 2 * tm * d * in_isz                    # double-buffered z tiles
    o_bufs = 2 * tm * o * out_isz                   # double-buffered out tiles
    w_bufs = 2 * d * degree * kp * in_isz           # worst case (no Buffered(1))
    c_bufs = 2 * kp * o * in_isz
    b_bufs = 2 * o * 4
    interm = tm * degree * kp * 4 + 2 * tm * kp * 4  # p / out / y f32 temporaries
    return z_bufs + o_bufs + w_bufs + c_bufs + b_bufs + interm


def _pick_tm(n_rows, d, kp, degree, o, in_isz, out_isz, tm_max=1024):
    tm = min(tm_max, _round_up(max(n_rows, 8), 8))
    if n_rows > 8:
        # Guarantee >= 2 grid steps so v7x megacore can shard the row grid.
        tm = min(tm, _round_up(-(-n_rows // 2), 8))
    while tm > 8 and _vmem_estimate(tm, d, kp, degree, o,
                                    in_isz, out_isz) > _VMEM_TILE_BUDGET:
        tm = max(8, _round_up(tm // 2, 8))
    return tm


# ---------------------------------------------------------------------------
# Wrapper: pallas_call with lane-exact output and no row padding.
# ---------------------------------------------------------------------------
def cp_sparse_degree_lu_forward(z_flat, w_all, c_w, c_b, *, tm_max=1024):
    """z_flat: (N, d); w_all: (d, degree*kp); c_w: (kp, o); c_b: (1, o) f32.
    Returns (N, o) in z_flat.dtype."""
    N, d = z_flat.shape
    degree_kp = w_all.shape[1]
    kp, o = c_w.shape
    degree = degree_kp // kp

    in_isz = jnp.dtype(z_flat.dtype).itemsize
    out_isz = in_isz
    tm = _pick_tm(N, d, kp, degree, o, in_isz, out_isz, tm_max=tm_max)
    grid = (pl.cdiv(N, tm),)

    est = _vmem_estimate(tm, d, kp, degree, o, in_isz, out_isz)
    vmem_limit = int(min(max(est + est // 2, 8 << 20), _VMEM_LIMIT_CAP))

    kernel = functools.partial(_cp_kernel, degree=degree, kp=kp)

    def build(weight_mode):
        wkw = {} if weight_mode is None else {"pipeline_mode": weight_mode}
        return pl.pallas_call(
            kernel,
            out_shape=jax.ShapeDtypeStruct((N, o), z_flat.dtype),
            grid=grid,
            in_specs=[
                pl.BlockSpec((tm, d), lambda i: (i, 0)),                # z rows
                pl.BlockSpec((d, degree_kp), lambda i: (0, 0), **wkw),  # fused U's
                pl.BlockSpec((kp, o), lambda i: (0, 0), **wkw),         # C weight
                pl.BlockSpec((1, o), lambda i: (0, 0), **wkw),          # C bias
            ],
            out_specs=pl.BlockSpec((tm, o), lambda i: (i, 0)),
            compiler_params=pltpu.CompilerParams(
                dimension_semantics=("parallel",),
                vmem_limit_bytes=vmem_limit),
        )

    try:
        # Weights have constant index maps -> single-buffer them (saves one
        # full VMEM copy of W_all + C at zero perf cost).
        return build(pl.Buffered(1))(z_flat, w_all, c_w, c_b)
    except Exception:
        # Fallback if this Pallas build rejects buffer_count=1 for inputs.
        return build(None)(z_flat, w_all, c_w, c_b)


# ---------------------------------------------------------------------------
# Host-side packing: fuse + lane-pad the (already masked) weights.
# ---------------------------------------------------------------------------
def pack_params(w_stack, c_w, c_b, dtype=jnp.float32):
    """w_stack: (degree, d, k) pre-masked, pre-transposed; c_w: (k, o); c_b: (1, o).
    Returns (w_all (d, degree*kp), c_w_pad (kp, o), c_b (1, o) f32)."""
    degree, d, k = w_stack.shape
    o = c_w.shape[1]
    kp = _round_up(k, LANE)   # internal rank padding only (never hits HBM output)

    w_all = jnp.zeros((d, degree * kp), dtype)
    for i in range(degree):
        w_all = w_all.at[:, i * kp:i * kp + k].set(w_stack[i].astype(dtype))

    c_w_pad = jnp.zeros((kp, o), dtype).at[:k, :].set(c_w.astype(dtype))
    c_b = c_b.astype(jnp.float32).reshape(1, o)
    return w_all, c_w_pad, c_b


# ---------------------------------------------------------------------------
# Deterministic parameter construction (mirrors the PyTorch __init__).
# ---------------------------------------------------------------------------
def make_params(key, degree, d, k, o, l_offset=0, u_offset=0):
    keys = jax.random.split(key, degree + 2)

    def linear_weight(kk, fan_in, shape):
        bound = 1.0 / jnp.sqrt(fan_in)
        return jax.random.uniform(kk, shape, jnp.float32, -bound, bound)

    # TODO(synk): ut.generate_masks is not available; using all-ones masks so
    # the sparsity pattern reduces to the triangular L/U masks only.
    gen_masks = [jnp.ones((k, d), jnp.float32) for _ in range(degree)]

    ones = jnp.ones((k, d), jnp.float32)
    if d > k:
        mask_1 = jnp.triu(ones, k=u_offset)   # odd-degree masks
        mask_2 = jnp.tril(ones, k=l_offset)   # even-degree masks
        odd_fn = lambda w: jnp.triu(w, k=u_offset)
        even_fn = lambda w: jnp.tril(w, k=l_offset)
    else:
        mask_1 = jnp.tril(ones, k=l_offset)
        mask_2 = jnp.triu(ones, k=u_offset)
        odd_fn = lambda w: jnp.tril(w, k=l_offset)
        even_fn = lambda w: jnp.triu(w, k=u_offset)

    w_list = []
    for i in range(1, degree + 1):
        w_raw = linear_weight(keys[i - 1], d, (k, d))
        if i % 2 == 1:
            mask_i = gen_masks[i - 1] * mask_1
            u_i = odd_fn(w_raw) * mask_i
        else:
            mask_i = gen_masks[i - 1] * mask_2
            u_i = even_fn(w_raw) * mask_i
        w_list.append((mask_i * u_i).T)          # effective W_i^T, (d, k)
    w_stack = jnp.stack(w_list, axis=0)          # (degree, d, k)

    c_weight = linear_weight(keys[degree], k, (o, k))
    bound = 1.0 / jnp.sqrt(k)
    c_bias = jax.random.uniform(keys[degree + 1], (o,), jnp.float32,
                                -bound, bound)
    return w_stack, c_weight.T, c_bias.reshape(1, o)   # (deg,d,k), (k,o), (1,o)


# ---------------------------------------------------------------------------
# Pure-JAX reference (mirrors the PyTorch forward exactly).
# ---------------------------------------------------------------------------
def reference_forward(z_flat, w_stack, c_w, c_b):
    degree = w_stack.shape[0]
    out = z_flat @ w_stack[0]
    for i in range(1, degree):
        out = (z_flat @ w_stack[i]) * out + out
    return out @ c_w + c_b


if __name__ == "__main__":
    degree, d, k, o = 3, 32, 16, 8          # d > k -> triu/tril branch 1
    B, S = 2, 8                             # z: (B, S, d), N = 16 rows

    key = jax.random.PRNGKey(0)
    kz, kparams = jax.random.split(key)
    z = jax.random.normal(kz, (B, S, d), jnp.float32)
    z_flat = z.reshape(-1, d)

    w_stack, c_w, c_b = make_params(kparams, degree, d, k, o)
    y_ref = reference_forward(z_flat, w_stack, c_w, c_b).reshape(B, S, o)

    # f32 path (bit-level agreement with the reference forward).
    w_all, c_w_pad, c_b_pad = pack_params(w_stack, c_w, c_b, dtype=jnp.float32)
    y = cp_sparse_degree_lu_forward(z_flat, w_all, c_w_pad, c_b_pad)
    y = y.reshape(B, S, o)
    jax.block_until_ready(y)
    assert jnp.allclose(y, y_ref, atol=1e-5, rtol=1e-5), "f32 kernel mismatch"

    # bf16 operand path (v6e/v7x MXU-native, halves z read bytes); f32 accum.
    w_all16, c_w16, c_b16 = pack_params(w_stack, c_w, c_b, dtype=jnp.bfloat16)
    y16 = cp_sparse_degree_lu_forward(z_flat.astype(jnp.bfloat16),
                                      w_all16, c_w16, c_b16).reshape(B, S, o)
    jax.block_until_ready(y16)
    assert jnp.allclose(y16.astype(jnp.float32), y_ref, atol=5e-2, rtol=5e-2), \
        "bf16 kernel mismatch"

    print("KERNEL_OK")
</pallas_src>

<mosaic_0001>
module attributes {stable_mosaic.version = 11 : i64} {
  func.func @_cp_kernel(%arg0: i32, %arg1: memref<8x32xf32, #tpu.memory_space<vmem>>, %arg2: memref<32x384xf32, #tpu.memory_space<vmem>>, %arg3: memref<128x8xf32, #tpu.memory_space<vmem>>, %arg4: memref<1x8xf32, #tpu.memory_space<vmem>>, %arg5: memref<8x8xf32, #tpu.memory_space<vmem>>) attributes {dimension_semantics = [#tpu.dimension_semantics<parallel>], iteration_bounds = array<i64: 2>, scalar_prefetch = 0 : i64, scratch_operands = 0 : i64, tpu.core_type = #tpu.core_type<tc>, window_params = [{transform_indices = @transform_0, window_bounds = array<i64: 8, 32>}, {pipeline_mode = #tpu.pipeline_mode<synchronous>, transform_indices = @transform_1, window_bounds = array<i64: 32, 384>}, {pipeline_mode = #tpu.pipeline_mode<synchronous>, transform_indices = @transform_2, window_bounds = array<i64: 128, 8>}, {pipeline_mode = #tpu.pipeline_mode<synchronous>, transform_indices = @transform_3, window_bounds = array<i64: 1, 8>}, {transform_indices = @transform_4, window_bounds = array<i64: 8, 8>}]} {
    %c0 = arith.constant 0 : index
    %c0_0 = arith.constant 0 : index
    %0 = vector.load %arg1[%c0, %c0_0] : memref<8x32xf32, #tpu.memory_space<vmem>>, vector<8x32xf32>
    %c0_1 = arith.constant 0 : index
    %c0_2 = arith.constant 0 : index
    %1 = vector.load %arg2[%c0_1, %c0_2] : memref<32x384xf32, #tpu.memory_space<vmem>>, vector<32x384xf32>
    %cst = arith.constant dense<0.000000e+00> : vector<8x384xf32>
    %2 = tpu.matmul %0, %1, %cst {dimension_numbers = #tpu.dot_dimension_numbers<[1], [0], [0], [1], [0, 0, 1, 1], [], []>} : vector<8x32xf32>, vector<32x384xf32>, vector<8x384xf32> -> vector<8x384xf32>
    %3 = vector.extract_strided_slice %2 {offsets = [0, 0], sizes = [8, 128], strides = [1, 1]} : vector<8x384xf32> to vector<8x128xf32>
    %4 = vector.extract_strided_slice %2 {offsets = [0, 128], sizes = [8, 128], strides = [1, 1]} : vector<8x384xf32> to vector<8x128xf32>
    %cst_3 = arith.constant 1.000000e+00 : f32
    %5 = vector.broadcast %cst_3 : f32 to vector<8x128xf32>
    %6 = arith.addf %4, %5 : vector<8x128xf32>
    %7 = arith.mulf %3, %6 : vector<8x128xf32>
    %8 = vector.extract_strided_slice %2 {offsets = [0, 256], sizes = [8, 128], strides = [1, 1]} : vector<8x384xf32> to vector<8x128xf32>
    %cst_4 = arith.constant 1.000000e+00 : f32
    %9 = vector.broadcast %cst_4 : f32 to vector<8x128xf32>
    %10 = arith.addf %8, %9 : vector<8x128xf32>
    %11 = arith.mulf %7, %10 : vector<8x128xf32>
    %c0_5 = arith.constant 0 : index
    %c0_6 = arith.constant 0 : index
    %12 = vector.load %arg3[%c0_5, %c0_6] : memref<128x8xf32, #tpu.memory_space<vmem>>, vector<128x8xf32>
    %cst_7 = arith.constant dense<0.000000e+00> : vector<8x8xf32>
    %13 = tpu.matmul %11, %12, %cst_7 {dimension_numbers = #tpu.dot_dimension_numbers<[1], [0], [0], [1], [0, 0, 1, 1], [], []>} : vector<8x128xf32>, vector<128x8xf32>, vector<8x8xf32> -> vector<8x8xf32>
    %c0_8 = arith.constant 0 : index
    %c0_9 = arith.constant 0 : index
    %14 = vector.load %arg4[%c0_8, %c0_9] : memref<1x8xf32, #tpu.memory_space<vmem>>, vector<1x8xf32>
    %15 = vector.broadcast %14 : vector<1x8xf32> to vector<8x8xf32>
    %16 = arith.addf %13, %15 : vector<8x8xf32>
    %c0_10 = arith.constant 0 : index
    %c0_11 = arith.constant 0 : index
    %17 = vector.load %arg5[%c0_10, %c0_11] : memref<8x8xf32, #tpu.memory_space<vmem>>, vector<8x8xf32>
    tpu.vector_store %arg5[%c0_10, %c0_11], %16 {strides = array<i32>} : memref<8x8xf32, #tpu.memory_space<vmem>>, vector<8x8xf32>,
    return
  }
  func.func @transform_0(%arg0: i32) -> (i32, i32) {
    %c0_i32 = arith.constant 0 : i32
    %c0_i32_0 = arith.constant 0 : i32
    return %arg0, %c0_i32 : i32, i32
  }
  func.func @transform_1(%arg0: i32) -> (i32, i32) {
    %c0_i32 = arith.constant 0 : i32
    %c0_i32_0 = arith.constant 0 : i32
    %c0_i32_1 = arith.constant 0 : i32
    return %c0_i32, %c0_i32_0 : i32, i32
  }
  func.func @transform_2(%arg0: i32) -> (i32, i32) {
    %c0_i32 = arith.constant 0 : i32
    %c0_i32_0 = arith.constant 0 : i32
    %c0_i32_1 = arith.constant 0 : i32
    return %c0_i32, %c0_i32_0 : i32, i32
  }
  func.func @transform_3(%arg0: i32) -> (i32, i32) {
    %c0_i32 = arith.constant 0 : i32
    %c0_i32_0 = arith.constant 0 : i32
    %c0_i32_1 = arith.constant 0 : i32
    return %c0_i32, %c0_i32_0 : i32, i32
  }
  func.func @transform_4(%arg0: i32) -> (i32, i32) {
    %c0_i32 = arith.constant 0 : i32
    %c0_i32_0 = arith.constant 0 : i32
    return %arg0, %c0_i32 : i32, i32
  }
}

module attributes {stable_mosaic.version = 11 : i64} {
  func.func @_cp_kernel(%arg0: i32, %arg1: memref<8x32xf32, #tpu.memory_space<vmem>>, %arg2: memref<32x384xf32, #tpu.memory_space<vmem>>, %arg3: memref<128x8xf32, #tpu.memory_space<vmem>>, %arg4: memref<1x8xf32, #tpu.memory_space<vmem>>, %arg5: memref<8x8xf32, #tpu.memory_space<vmem>>) attributes {dimension_semantics = [#tpu.dimension_semantics<parallel>], iteration_bounds = array<i64: 2>, scalar_prefetch = 0 : i64, scratch_operands = 0 : i64, tpu.core_type = #tpu.core_type<tc>, window_params = [{transform_indices = @transform_0, window_bounds = array<i64: 8, 32>}, {pipeline_mode = #tpu.pipeline_mode<synchronous>, transform_indices = @transform_1, window_bounds = array<i64: 32, 384>}, {pipeline_mode = #tpu.pipeline_mode<synchronous>, transform_indices = @transform_2, window_bounds = array<i64: 128, 8>}, {pipeline_mode = #tpu.pipeline_mode<synchronous>, transform_indices = @transform_3, window_bounds = array<i64: 1, 8>}, {transform_indices = @transform_4, window_bounds = array<i64: 8, 8>}]} {
    %c0 = arith.constant 0 : index
    %c0_0 = arith.constant 0 : index
    %0 = vector.load %arg1[%c0, %c0_0] : memref<8x32xf32, #tpu.memory_space<vmem>>, vector<8x32xf32>
    %c0_1 = arith.constant 0 : index
    %c0_2 = arith.constant 0 : index
    %1 = vector.load %arg2[%c0_1, %c0_2] : memref<32x384xf32, #tpu.memory_space<vmem>>, vector<32x384xf32>
    %cst = arith.constant dense<0.000000e+00> : vector<8x384xf32>
    %2 = tpu.matmul %0, %1, %cst {dimension_numbers = #tpu.dot_dimension_numbers<[1], [0], [0], [1], [0, 0, 1, 1], [], []>} : vector<8x32xf32>, vector<32x384xf32>, vector<8x384xf32> -> vector<8x384xf32>
    %3 = vector.extract_strided_slice %2 {offsets = [0, 0], sizes = [8, 128], strides = [1, 1]} : vector<8x384xf32> to vector<8x128xf32>
    %4 = vector.extract_strided_slice %2 {offsets = [0, 128], sizes = [8, 128], strides = [1, 1]} : vector<8x384xf32> to vector<8x128xf32>
    %cst_3 = arith.constant 1.000000e+00 : f32
    %5 = vector.broadcast %cst_3 : f32 to vector<8x128xf32>
    %6 = arith.addf %4, %5 : vector<8x128xf32>
    %7 = arith.mulf %3, %6 : vector<8x128xf32>
    %8 = vector.extract_strided_slice %2 {offsets = [0, 256], sizes = [8, 128], strides = [1, 1]} : vector<8x384xf32> to vector<8x128xf32>
    %cst_4 = arith.constant 1.000000e+00 : f32
    %9 = vector.broadcast %cst_4 : f32 to vector<8x128xf32>
    %10 = arith.addf %8, %9 : vector<8x128xf32>
    %11 = arith.mulf %7, %10 : vector<8x128xf32>
    %c0_5 = arith.constant 0 : index
    %c0_6 = arith.constant 0 : index
    %12 = vector.load %arg3[%c0_5, %c0_6] : memref<128x8xf32, #tpu.memory_space<vmem>>, vector<128x8xf32>
    %cst_7 = arith.constant dense<0.000000e+00> : vector<8x8xf32>
    %13 = tpu.matmul %11, %12, %cst_7 {dimension_numbers = #tpu.dot_dimension_numbers<[1], [0], [0], [1], [0, 0, 1, 1], [], []>} : vector<8x128xf32>, vector<128x8xf32>, vector<8x8xf32> -> vector<8x8xf32>
    %c0_8 = arith.constant 0 : index
    %c0_9 = arith.constant 0 : index
    %14 = vector.load %arg4[%c0_8, %c0_9] : memref<1x8xf32, #tpu.memory_space<vmem>>, vector<1x8xf32>
    %15 = vector.broadcast %14 : vector<1x8xf32> to vector<8x8xf32>
    %16 = arith.addf %13, %15 : vector<8x8xf32>
    %c0_10 = arith.constant 0 : index
    %c0_11 = arith.constant 0 : index
    %17 = vector.load %arg5[%c0_10, %c0_11] : memref<8x8xf32, #tpu.memory_space<vmem>>, vector<8x8xf32>
    tpu.vector_store %arg5[%c0_10, %c0_11], %16 {strides = array<i32>} : memref<8x8xf32, #tpu.memory_space<vmem>>, vector<8x8xf32>,
    return
  }
  func.func @transform_0(%arg0: i32) -> (i32, i32) {
    %c0_i32 = arith.constant 0 : i32
    %c0_i32_0 = arith.constant 0 : i32
    return %arg0, %c0_i32 : i32, i32
  }
  func.func @transform_1(%arg0: i32) -> (i32, i32) {
    %c0_i32 = arith.constant 0 : i32
    %c0_i32_0 = arith.constant 0 : i32
    %c0_i32_1 = arith.constant 0 : i32
    return %c0_i32, %c0_i32_0 : i32, i32
  }
  func.func @transform_2(%arg0: i32) -> (i32, i32) {
    %c0_i32 = arith.constant 0 : i32
    %c0_i32_0 = arith.constant 0 : i32
    %c0_i32_1 = arith.constant 0 : i32
    return %c0_i32, %c0_i32_0 : i32, i32
  }
  func.func @transform_3(%arg0: i32) -> (i32, i32) {
    %c0_i32 = arith.constant 0 : i32
    %c0_i32_0 = arith.constant 0 : i32
    %c0_i32_1 = arith.constant 0 : i32
    return %c0_i32, %c0_i32_0 : i32, i32
  }
  func.func @transform_4(%arg0: i32) -> (i32, i32) {
    %c0_i32 = arith.constant 0 : i32
    %c0_i32_0 = arith.constant 0 : i32
    return %arg0, %c0_i32 : i32, i32
  }
}

</mosaic_0001>

<llo_original>
// kernel: tpu_custom_call.1
$region0: #{tpu_custom_call.1}
  #allocation0 [shape = 'u32[]', space=smem, size = 0x4, offset = 0x4, fixed_abs, tag = 'smem constant byte address 0x4 - core index']
  #allocation1 [shape = 'u32[144,128]{1,0:T(1,128)}', space=vmem, size = 0x12000, scoped, tag = 'internal scratch']
  %s0 = inlined_call_operand.vmem [shape: f32[16,32], index: 0, kind: input, shape index: {}]
  %s1 = inlined_call_operand.vmem [shape: f32[32,384], index: 1, kind: input, shape index: {}]
  %s2 = inlined_call_operand.vmem [shape: f32[128,8], index: 2, kind: input, shape index: {}]
  %s3 = inlined_call_operand.vmem [shape: f32[1,8], index: 3, kind: input, shape index: {}]
  %s4 = inlined_call_operand.vmem [shape: f32[16,8], index: 4, kind: output, shape index: {}]
  %s5 = sld [smem:[#allocation0]]
  $region49: #{tpu_custom_call.1} parent=0
    _
  %s7 = ssub.s32 1, %s5
  %s8 = scalar_select 0, %s7, %s5
  loop: start=0, step=1, limit=4
  $region2: #{tpu_custom_call.1} parent=0 // loop_pre_header
    _
  $region3: #{tpu_custom_call.1} parent=0 // loop_header
    %s10 = sphi 0, %s14
    %p11 = scmp.ge.s32.totalorder %s10, 4
    %s20 = sphi 0, %s22
    %s23 = sphi 0, %s20
    %s24 = sphi 0, %s23
    %s40 = sphi 0, %s24
    %s44 = sphi 0, %s44
    %s46 = sphi 0, %s44
    %s47 = sphi 0, %s46
    %s61 = sphi 0, %s47
    %s65 = sphi 0, %s65
    %s67 = sphi 0, %s65
    %s68 = sphi 0, %s67
    %s82 = sphi 0, %s68
    %s86 = sphi 0, %s86
    %s88 = sphi 0, %s86
    %s89 = sphi 0, %s88
    %s103 = sphi 0, %s89
    %s109 = sphi 0, %s111
    %s112 = sphi 0, %s109
    %s113 = sphi 0, %s112
    %s129 = sphi 0, %s113
  $region4: #{tpu_custom_call.1} parent=0 // loop_header_branch
    %13 = sbr.rel (%p11) target = $region8
  $region5: #{tpu_custom_call.1} parent=0 // loop_body
    %s15 = ssub.s32 %s10, 1
    %s16 = ssub.s32 %s10, 2
    %s17 = sadd.s32 %s10, 1
    %s18 = ssub.s32 %s10, %s17
    %p19 = scmp.eq.s32.totalorder %s18, 0
    %s21 = sadd.s32 %s20, 1
    %s22 = scalar_select %p19, %s20, %s21
    %p25 = pneg %p19
    %p26 = scmp.eq.s32.totalorder %s10, 1
    %p27 = por %p25, %p26
    %p28 = scmp.ne.s32.totalorder %s20, %s23
    %p29 = scmp.eq.s32.totalorder %s10, 0
    %p30 = por %p28, %p29
    %p31 = scmp.ne.s32.totalorder %s20, %s23
    %p32 = scmp.eq.s32.totalorder %s15, 1
    %p33 = por %p31, %p32
    %p34 = scmp.ne.s32.totalorder %s23, %s24
    %p35 = scmp.eq.s32.totalorder %s15, 0
    %p36 = por %p34, %p35
    %p37 = scmp.ne.s32.totalorder %s23, %s24
    %p38 = scmp.eq.s32.totalorder %s16, 1
    %p39 = por %p37, %p38
    %p41 = scmp.ne.s32.totalorder %s24, %s40
    %p42 = scmp.eq.s32.totalorder %s16, 0
    %p43 = por %p41, %p42
    %s45 = sadd.s32 %s44, 1
    %p48 = scmp.eq.s32.totalorder %s10, 1
    %p49 = scmp.ne.s32.totalorder %s44, %s46
    %p50 = scmp.eq.s32.totalorder %s10, 0
    %p51 = por %p49, %p50
    %p52 = scmp.ne.s32.totalorder %s44, %s46
    %p53 = scmp.eq.s32.totalorder %s15, 1
    %p54 = por %p52, %p53
    %p55 = scmp.ne.s32.totalorder %s46, %s47
    %p56 = scmp.eq.s32.totalorder %s15, 0
    %p57 = por %p55, %p56
    %p58 = scmp.ne.s32.totalorder %s46, %s47
    %p59 = scmp.eq.s32.totalorder %s16, 1
    %p60 = por %p58, %p59
    %p62 = scmp.ne.s32.totalorder %s47, %s61
    %p63 = scmp.eq.s32.totalorder %s16, 0
    %p64 = por %p62, %p63
    %s66 = sadd.s32 %s65, 1
    %p69 = scmp.eq.s32.totalorder %s10, 1
    %p70 = scmp.ne.s32.totalorder %s65, %s67
    %p71 = scmp.eq.s32.totalorder %s10, 0
    %p72 = por %p70, %p71
    %p73 = scmp.ne.s32.totalorder %s65, %s67
    %p74 = scmp.eq.s32.totalorder %s15, 1
    %p75 = por %p73, %p74
    %p76 = scmp.ne.s32.totalorder %s67, %s68
    %p77 = scmp.eq.s32.totalorder %s15, 0
    %p78 = por %p76, %p77
    %p79 = scmp.ne.s32.totalorder %s67, %s68
    %p80 = scmp.eq.s32.totalorder %s16, 1
    %p81 = por %p79, %p80
    %p83 = scmp.ne.s32.totalorder %s68, %s82
    %p84 = scmp.eq.s32.totalorder %s16, 0
    %p85 = por %p83, %p84
    %s87 = sadd.s32 %s86, 1
    %p90 = scmp.eq.s32.totalorder %s10, 1
    %p91 = scmp.ne.s32.totalorder %s86, %s88
    %p92 = scmp.eq.s32.totalorder %s10, 0
    %p93 = por %p91, %p92
    %p94 = scmp.ne.s32.totalorder %s86, %s88
    %p95 = scmp.eq.s32.totalorder %s15, 1
    %p96 = por %p94, %p95
    %p97 = scmp.ne.s32.totalorder %s88, %s89
    %p98 = scmp.eq.s32.totalorder %s15, 0
    %p99 = por %p97, %p98
    %p100 = scmp.ne.s32.totalorder %s88, %s89
    %p101 = scmp.eq.s32.totalorder %s16, 1
    %p102 = por %p100, %p101
    %p104 = scmp.ne.s32.totalorder %s89, %s103
    %p105 = scmp.eq.s32.totalorder %s16, 0
    %p106 = por %p104, %p105
    %s107 = ssub.s32 %s10, %s17
    %p108 = scmp.eq.s32.totalorder %s107, 0
    %s110 = sadd.s32 %s109, 1
    %s111 = scalar_select %p108, %s109, %s110
    %p114 = pneg %p108
    %p115 = scmp.eq.s32.totalorder %s10, 1
    %p116 = por %p114, %p115
    %p117 = scmp.ne.s32.totalorder %s109, %s112
    %p118 = scmp.eq.s32.totalorder %s10, 0
    %p119 = por %p117, %p118
    %p120 = scmp.ne.s32.totalorder %s109, %s112
    %p121 = scmp.eq.s32.totalorder %s15, 1
    %p122 = por %p120, %p121
    %p123 = scmp.ne.s32.totalorder %s112, %s113
    %p124 = scmp.eq.s32.totalorder %s15, 0
    %p125 = por %p123, %p124
    %p126 = scmp.ne.s32.totalorder %s112, %s113
    %p127 = scmp.eq.s32.totalorder %s16, 1
    %p128 = por %p126, %p127
    %p130 = scmp.ne.s32.totalorder %s113, %s129
    %p131 = scmp.eq.s32.totalorder %s16, 0
    %p132 = por %p130, %p131
    %p133 = scmp.le.s32.totalorder 1, %s10
    %p134 = scmp.lt.s32.totalorder %s10, 3
    %p135 = pnand %p133, %p134
    %p136 = pneg %p135
    // Predicated region
    $region9: #{tpu_custom_call.1} parent=5 // pred_check
      _
    $region10: #{tpu_custom_call.1} parent=5 // pred_check_branch
      %138 = sbr.rel (%p135) target = $region12
    $region11: #{tpu_custom_call.1} parent=5 // pred_region
      %s139 = ssub.s32 %s10, 1
      // Predicated region
      $region13: #{tpu_custom_call.1} parent=11 // pred_check
        %p140 = pneg %p57
      $region14: #{tpu_custom_call.1} parent=11 // pred_check_branch
        %142 = sbr.rel (%p140) target = $region16
      $region15: #{tpu_custom_call.1} parent=11 // pred_region
        _
      $region16: #{tpu_custom_call.1} parent=11 // pred_fallthru
        _
      // Predicated region
      $region17: #{tpu_custom_call.1} parent=11 // pred_check
        %p143 = pneg %p78
      $region18: #{tpu_custom_call.1} parent=11 // pred_check_branch
        %145 = sbr.rel (%p143) target = $region20
      $region19: #{tpu_custom_call.1} parent=11 // pred_region
        _
      $region20: #{tpu_custom_call.1} parent=11 // pred_fallthru
        _
      // Predicated region
      $region21: #{tpu_custom_call.1} parent=11 // pred_check
        %p146 = pneg %p99
      $region22: #{tpu_custom_call.1} parent=11 // pred_check_branch
        %148 = sbr.rel (%p146) target = $region24
      $region23: #{tpu_custom_call.1} parent=11 // pred_region
        _
      $region24: #{tpu_custom_call.1} parent=11 // pred_fallthru
        _
    $region12: #{tpu_custom_call.1} parent=5 // pred_fallthru
      _
    %p149 = scmp.lt.s32.totalorder %s10, 2
    // Predicated region
    $region25: #{tpu_custom_call.1} parent=5 // pred_check
      %p150 = pneg %p149
    $region26: #{tpu_custom_call.1} parent=5 // pred_check_branch
      %152 = sbr.rel (%p150) target = $region28
    $region27: #{tpu_custom_call.1} parent=5 // pred_region
      // Predicated region
      $region29: #{tpu_custom_call.1} parent=27 // pred_check
        %p153 = pneg %p30
      $region30: #{tpu_custom_call.1} parent=27 // pred_check_branch
        %155 = sbr.rel (%p153) target = $region32
      $region31: #{tpu_custom_call.1} parent=27 // pred_region
        %p156 = scmp.lt.s32.totalorder %s10, 1
        %s157 = scalar_select %p156, %s10, 1
        %s158 = smul.addr %s157, 8
        %s159 = scalar_lea.vmem %s0, %s158
      $region32: #{tpu_custom_call.1} parent=27 // pred_fallthru
        _
    $region28: #{tpu_custom_call.1} parent=5 // pred_fallthru
      _
    %p160 = scmp.le.s32.totalorder 1, %s10
    %p161 = scmp.lt.s32.totalorder %s10, 3
    %p162 = pnand %p160, %p161
    %p163 = pneg %p162
    // Predicated region
    $region33: #{tpu_custom_call.1} parent=5 // pred_check
      _
    $region34: #{tpu_custom_call.1} parent=5 // pred_check_branch
      %165 = sbr.rel (%p162) target = $region36
    $region35: #{tpu_custom_call.1} parent=5 // pred_region
      %s166 = ssub.s32 %s10, 1
      %p167 = scmp.lt.s32.totalorder %s15, 1
      %s168 = scalar_select %p167, %s15, 1
      %s169 = smul.addr %s168, 8
      %s170 = scalar_lea.vmem %s0, %s169
      %p171 = pneg %p36
      %p172 = pneg %p33
      %p173 = pneg %p57
      %p174 = pneg %p54
      %p175 = pneg %p78
      %p176 = pneg %p75
      %p177 = pneg %p99
      %p178 = pneg %p96
      %p179 = pneg %p125
      %p180 = pneg %p122
      %p181 = scmp.lt.s32.totalorder %s15, 1
      %s182 = scalar_select %p181, %s15, 1
      %s183 = smul.addr %s182, 8
      %s184 = scalar_lea.vmem %s4, %s183
      %p185 = scmp.lt.s32.totalorder %s15, 1
      %s186 = scalar_select %p185, %s15, 1
      %s187 = smul.addr %s186, 8
      %s188 = scalar_lea.vmem %s0, %s187
      %p189 = scmp.lt.s32.totalorder %s15, 1
      %s190 = scalar_select %p189, %s15, 1
      %s191 = smul.addr %s190, 8
      %s192 = scalar_lea.vmem %s4, %s191
      %v193 = vld [vmem:[%s188] sm:$0xff]
      %v194 = vld [vmem:[%s1] sm:$0xff]
      %v195 = vld [vmem:[%s1 + $0x8] sm:$0xff]
      %v196 = vld [vmem:[%s1 + $0x10] sm:$0xff]
      %v197 = vld [vmem:[%s1 + $0x18] sm:$0xff]
      %v198 = vld [vmem:[%s1 + $0x20] sm:$0xff]
      %v199 = vld [vmem:[%s1 + $0x28] sm:$0xff]
      %v200 = vld [vmem:[%s1 + $0x30] sm:$0xff]
      %v201 = vld [vmem:[%s1 + $0x38] sm:$0xff]
      %v202 = vld [vmem:[%s1 + $0x40] sm:$0xff]
      %v203 = vld [vmem:[%s1 + $0x48] sm:$0xff]
      %v204 = vld [vmem:[%s1 + $0x50] sm:$0xff]
      %v205 = vld [vmem:[%s1 + $0x58] sm:$0xff]
      %vm206 = vcmask 261120
      %v208 = vsel %vm206, %v193, 0
      %210 = vmatprep.subr.mxu0 0.0
      %211 = vmatpush1.msra.mxu0 0.0
      %212 = vmatprep.subr.mxu0 0.0
      %213 = vmatpush1.msra.mxu0 0.0
      %214 = vmatprep.subr.mxu0 0.0
      %215 = vmatpush1.msra.mxu0 0.0
      %216 = vmatprep.subr.mxu0 0.0
      %217 = vmatpush1.msra.mxu0 0.0
      %218 = vmatprep.subr.mxu0 0.0
      %219 = vmatpush1.msra.mxu0 0.0
      %220 = vmatprep.subr.mxu0 0.0
      %221 = vmatpush1.msra.mxu0 0.0
      %222 = vmatprep.subr.mxu0 0.0
      %223 = vmatpush1.msra.mxu0 0.0
      %224 = vmatprep.subr.mxu0 0.0
      %225 = vmatpush1.msra.mxu0 0.0
      %226 = vmatprep.subr.mxu0 0.0
      %227 = vmatpush1.msra.mxu0 0.0
      %228 = vmatprep.subr.mxu0 0.0
      %229 = vmatpush1.msra.mxu0 0.0
      %230 = vmatprep.subr.mxu0 0.0
      %231 = vmatpush1.msra.mxu0 0.0
      %232 = vmatprep.subr.mxu0 0.0
      %233 = vmatpush1.msra.mxu0 0.0
      %234 = vmatprep.subr.mxu0 %v204
      %235 = vmatpush1.msra.mxu0 %v203
      %236 = vmatprep.subr.mxu0 %v201
      %237 = vmatpush1.msra.mxu0 %v200
      %238 = vmatprep.subr.mxu0 %v198
      %239 = vmatpush1.msra.mxu0 %v197
      %240 = vmatprep.subr.mxu0 %v195
      %241 = vmatpush1.msra.mxu0 %v194
      %242 = vmatprep.subr.mxu0 0.0
      %243 = vmatpush2.msra.mxu0 0.0
      %244 = vmatprep.subr.mxu0 0.0
      %245 = vmatpush2.msra.mxu0 0.0
      %246 = vmatprep.subr.mxu0 0.0
      %247 = vmatpush2.msra.mxu0 0.0
      %248 = vmatprep.subr.mxu0 0.0
      %249 = vmatpush2.msra.mxu0 0.0
      %250 = vmatprep.subr.mxu0 0.0
      %251 = vmatpush2.msra.mxu0 0.0
      %252 = vmatprep.subr.mxu0 0.0
      %253 = vmatpush2.msra.mxu0 0.0
      %254 = vmatprep.subr.mxu0 0.0
      %255 = vmatpush2.msra.mxu0 0.0
      %256 = vmatprep.subr.mxu0 0.0
      %257 = vmatpush2.msra.mxu0 0.0
      %258 = vmatprep.subr.mxu0 0.0
      %259 = vmatpush2.msra.mxu0 0.0
      %260 = vmatprep.subr.mxu0 0.0
      %261 = vmatpush2.msra.mxu0 0.0
      %262 = vmatprep.subr.mxu0 0.0
      %263 = vmatpush2.msra.mxu0 0.0
      %264 = vmatprep.subr.mxu0 0.0
      %265 = vmatpush2.msra.mxu0 0.0
      %266 = vmatprep.subr.mxu0 0.0
      %267 = vmatpush2.msra.mxu0 0.0
      %268 = vmatprep.subr.mxu0 0.0
      %269 = vmatpush2.msra.mxu0 0.0
      %270 = vmatprep.subr.mxu0 0.0
      %271 = vmatpush2.msra.mxu0 0.0
      %272 = vmatprep.subr.mxu0 0.0
      %273 = vmatpush2.msra.mxu0 0.0
      %274 = vmatprep.mubr.f32.mxu0 0.0
      %275 = vmatmul.mubr.f32.gmra.mxu0 %v208
      %v276 = vpop.f32.mrf.mxu0
      %v277 = vadd.f32 0.0, %v276
      %v278 = vpop.f32.mrf.mxu0
      %v279 = vadd.f32 0.0, %v278
      %280 = vdwg.mxu0
      %281 = vmatprep.subr.mxu0 0.0
      %282 = vmatpush1.msra.mxu0 0.0
      %283 = vmatprep.subr.mxu0 0.0
      %284 = vmatpush1.msra.mxu0 0.0
      %285 = vmatprep.subr.mxu0 0.0
      %286 = vmatpush1.msra.mxu0 0.0
      %287 = vmatprep.subr.mxu0 0.0
      %288 = vmatpush1.msra.mxu0 0.0
      %289 = vmatprep.subr.mxu0 0.0
      %290 = vmatpush1.msra.mxu0 0.0
      %291 = vmatprep.subr.mxu0 0.0
      %292 = vmatpush1.msra.mxu0 0.0
      %293 = vmatprep.subr.mxu0 0.0
      %294 = vmatpush1.msra.mxu0 0.0
      %295 = vmatprep.subr.mxu0 0.0
      %296 = vmatpush1.msra.mxu0 0.0
      %297 = vmatprep.subr.mxu0 0.0
      %298 = vmatpush1.msra.mxu0 0.0
      %299 = vmatprep.subr.mxu0 0.0
      %300 = vmatpush1.msra.mxu0 0.0
      %301 = vmatprep.subr.mxu0 0.0
      %302 = vmatpush1.msra.mxu0 0.0
      %303 = vmatprep.subr.mxu0 0.0
      %304 = vmatpush1.msra.mxu0 0.0
      %305 = vmatprep.subr.mxu0 0.0
      %306 = vmatpush1.msra.mxu0 %v205
      %307 = vmatprep.subr.mxu0 0.0
      %308 = vmatpush1.msra.mxu0 %v202
      %309 = vmatprep.subr.mxu0 0.0
      %310 = vmatpush1.msra.mxu0 %v199
      %311 = vmatprep.subr.mxu0 0.0
      %312 = vmatpush1.msra.mxu0 %v196
      %313 = vmatprep.subr.mxu0 0.0
      %314 = vmatpush2.msra.mxu0 0.0
      %315 = vmatprep.subr.mxu0 0.0
      %316 = vmatpush2.msra.mxu0 0.0
      %317 = vmatprep.subr.mxu0 0.0
      %318 = vmatpush2.msra.mxu0 0.0
      %319 = vmatprep.subr.mxu0 0.0
      %320 = vmatpush2.msra.mxu0 0.0
      %321 = vmatprep.subr.mxu0 0.0
      %322 = vmatpush2.msra.mxu0 0.0
      %323 = vmatprep.subr.mxu0 0.0
      %324 = vmatpush2.msra.mxu0 0.0
      %325 = vmatprep.subr.mxu0 0.0
      %326 = vmatpush2.msra.mxu0 0.0
      %327 = vmatprep.subr.mxu0 0.0
      %328 = vmatpush2.msra.mxu0 0.0
      %329 = vmatprep.subr.mxu0 0.0
      %330 = vmatpush2.msra.mxu0 0.0
      %331 = vmatprep.subr.mxu0 0.0
      %332 = vmatpush2.msra.mxu0 0.0
      %333 = vmatprep.subr.mxu0 0.0
      %334 = vmatpush2.msra.mxu0 0.0
      %335 = vmatprep.subr.mxu0 0.0
      %336 = vmatpush2.msra.mxu0 0.0
      %337 = vmatprep.subr.mxu0 0.0
      %338 = vmatpush2.msra.mxu0 0.0
      %339 = vmatprep.subr.mxu0 0.0
      %340 = vmatpush2.msra.mxu0 0.0
      %341 = vmatprep.subr.mxu0 0.0
      %342 = vmatpush2.msra.mxu0 0.0
      %343 = vmatprep.subr.mxu0 0.0
      %344 = vmatpush2.msra.mxu0 0.0
      %345 = vmatprep.mubr.f32.mxu0 0.0
      %346 = vmatmul.mubr.f32.gmra.mxu0 %v208
      %v347 = vpop.f32.mrf.mxu0
      %v348 = vadd.f32 0.0, %v347
      %v349 = vpop.f32.mrf.mxu0
      %350 = vdwg.mxu0
      %v351 = vadd.f32 %v279, 1.0
      %v352 = vmul.f32 %v277, %v351
      %v353 = vadd.f32 %v348, 1.0
      %v354 = vmul.f32 %v352, %v353
      %v355 = vld [vmem:[%s2] sm:$0xff]
      %v356 = vld [vmem:[%s2 + $0x8] sm:$0xff]
      %v357 = vld [vmem:[%s2 + $0x10] sm:$0xff]
      %v358 = vld [vmem:[%s2 + $0x18] sm:$0xff]
      %v359 = vld [vmem:[%s2 + $0x20] sm:$0xff]
      %v360 = vld [vmem:[%s2 + $0x28] sm:$0xff]
      %v361 = vld [vmem:[%s2 + $0x30] sm:$0xff]
      %v362 = vld [vmem:[%s2 + $0x38] sm:$0xff]
      %v363 = vld [vmem:[%s2 + $0x40] sm:$0xff]
      %v364 = vld [vmem:[%s2 + $0x48] sm:$0xff]
      %v365 = vld [vmem:[%s2 + $0x50] sm:$0xff]
      %v366 = vld [vmem:[%s2 + $0x58] sm:$0xff]
      %v367 = vld [vmem:[%s2 + $0x60] sm:$0xff]
      %v368 = vld [vmem:[%s2 + $0x68] sm:$0xff]
      %v369 = vld [vmem:[%s2 + $0x70] sm:$0xff]
      %v370 = vld [vmem:[%s2 + $0x78] sm:$0xff]
      %v371 = vld [vmem:[%s3] sm:$0x1]
      %v373 = vlaneseq
      %v374 = vshrl.u32 %v373, 7
      %v375 = vsub.s32 0, %v374
      %v376 = vrot.slane %v371, %v375
      %378 = vmatprep.subr.mxu0 0.0
      %379 = vmatpush1.msra.mxu0 %v370
      %380 = vmatprep.subr.mxu0 0.0
      %381 = vmatpush1.msra.mxu0 %v369
      %382 = vmatprep.subr.mxu0 0.0
      %383 = vmatpush1.msra.mxu0 %v368
      %384 = vmatprep.subr.mxu0 0.0
      %385 = vmatpush1.msra.mxu0 %v367
      %386 = vmatprep.subr.mxu0 0.0
      %387 = vmatpush1.msra.mxu0 %v366
      %388 = vmatprep.subr.mxu0 0.0
      %389 = vmatpush1.msra.mxu0 %v365
      %390 = vmatprep.subr.mxu0 0.0
      %391 = vmatpush1.msra.mxu0 %v364
      %392 = vmatprep.subr.mxu0 0.0
      %393 = vmatpush1.msra.mxu0 %v363
      %394 = vmatprep.subr.mxu0 0.0
      %395 = vmatpush1.msra.mxu0 %v362
      %396 = vmatprep.subr.mxu0 0.0
      %397 = vmatpush1.msra.mxu0 %v361
      %398 = vmatprep.subr.mxu0 0.0
      %399 = vmatpush1.msra.mxu0 %v360
      %400 = vmatprep.subr.mxu0 0.0
      %401 = vmatpush1.msra.mxu0 %v359
      %402 = vmatprep.subr.mxu0 0.0
      %403 = vmatpush1.msra.mxu0 %v358
      %404 = vmatprep.subr.mxu0 0.0
      %405 = vmatpush1.msra.mxu0 %v357
      %406 = vmatprep.subr.mxu0 0.0
      %407 = vmatpush1.msra.mxu0 %v356
      %408 = vmatprep.subr.mxu0 0.0
      %409 = vmatpush1.msra.mxu0 %v355
      %410 = vmatprep.subr.mxu0 0.0
      %411 = vmatpush2.msra.mxu0 0.0
      %412 = vmatprep.subr.mxu0 0.0
      %413 = vmatpush2.msra.mxu0 0.0
      %414 = vmatprep.subr.mxu0 0.0
      %415 = vmatpush2.msra.mxu0 0.0
      %416 = vmatprep.subr.mxu0 0.0
      %417 = vmatpush2.msra.mxu0 0.0
      %418 = vmatprep.subr.mxu0 0.0
      %419 = vmatpush2.msra.mxu0 0.0
      %420 = vmatprep.subr.mxu0 0.0
      %421 = vmatpush2.msra.mxu0 0.0
      %422 = vmatprep.subr.mxu0 0.0
      %423 = vmatpush2.msra.mxu0 0.0
      %424 = vmatprep.subr.mxu0 0.0
      %425 = vmatpush2.msra.mxu0 0.0
      %426 = vmatprep.subr.mxu0 0.0
      %427 = vmatpush2.msra.mxu0 0.0
      %428 = vmatprep.subr.mxu0 0.0
      %429 = vmatpush2.msra.mxu0 0.0
      %430 = vmatprep.subr.mxu0 0.0
      %431 = vmatpush2.msra.mxu0 0.0
      %432 = vmatprep.subr.mxu0 0.0
      %433 = vmatpush2.msra.mxu0 0.0
      %434 = vmatprep.subr.mxu0 0.0
      %435 = vmatpush2.msra.mxu0 0.0
      %436 = vmatprep.subr.mxu0 0.0
      %437 = vmatpush2.msra.mxu0 0.0
      %438 = vmatprep.subr.mxu0 0.0
      %439 = vmatpush2.msra.mxu0 0.0
      %440 = vmatprep.subr.mxu0 0.0
      %441 = vmatpush2.msra.mxu0 0.0
      %442 = vmatprep.mubr.f32.mxu0 0.0
      %443 = vmatmul.mubr.f32.gmra.mxu0 %v354
      %v444 = vpop.f32.mrf.mxu0
      %v445 = vadd.f32 %v376, %v444
      %v446 = vpop.f32.mrf.mxu0
      %447 = vdwg.mxu0
      %vm448 = vcmask 64512
      %449 = vst.msk [vmem:[%s192] sm:$0xff] %vm448, %v445
      %p450 = scmp.lt.s32.totalorder %s15, 1
      %s451 = scalar_select %p450, %s15, 1
      %s452 = smul.addr %s451, 8
      %s453 = scalar_lea.vmem %s4, %s452
      // Predicated region
      $region37: #{tpu_custom_call.1} parent=35 // pred_check
        %p454 = pneg %p122
      $region38: #{tpu_custom_call.1} parent=35 // pred_check_branch
        %456 = sbr.rel (%p454) target = $region40
      $region39: #{tpu_custom_call.1} parent=35 // pred_region
        _
      $region40: #{tpu_custom_call.1} parent=35 // pred_fallthru
        _
    $region36: #{tpu_custom_call.1} parent=5 // pred_fallthru
      _
    %p457 = scmp.le.s32.totalorder 2, %s10
    // Predicated region
    $region41: #{tpu_custom_call.1} parent=5 // pred_check
      %p458 = pneg %p457
    $region42: #{tpu_custom_call.1} parent=5 // pred_check_branch
      %460 = sbr.rel (%p458) target = $region44
    $region43: #{tpu_custom_call.1} parent=5 // pred_region
      %s461 = ssub.s32 %s10, 2
      // Predicated region
      $region45: #{tpu_custom_call.1} parent=43 // pred_check
        %p462 = pneg %p128
      $region46: #{tpu_custom_call.1} parent=43 // pred_check_branch
        %464 = sbr.rel (%p462) target = $region48
      $region47: #{tpu_custom_call.1} parent=43 // pred_region
        %p465 = scmp.lt.s32.totalorder %s16, 1
        %s466 = scalar_select %p465, %s16, 1
        %s467 = smul.addr %s466, 8
        %s468 = scalar_lea.vmem %s4, %s467
      $region48: #{tpu_custom_call.1} parent=43 // pred_fallthru
        _
    $region44: #{tpu_custom_call.1} parent=5 // pred_fallthru
      _
  $region6: #{tpu_custom_call.1} parent=0 // loop_footer
    %s14 = sadd.s32 1, %s10
  $region7: #{tpu_custom_call.1} parent=0 // loop_footer_branch
    %9 = sbr.rel target = $region3
  $region8: #{tpu_custom_call.1} parent=0 // loop_exit
    _

// kernel: tpu_custom_call.1
$region0: #{tpu_custom_call.1}
  #allocation0 [shape = 'u32[]', space=smem, size = 0x4, offset = 0x4, fixed_abs, tag = 'smem constant byte address 0x4 - core index']
  #allocation1 [shape = 'u32[144,128]{1,0:T(1,128)}', space=vmem, size = 0x12000, scoped, tag = 'internal scratch']
  %s0 = inlined_call_operand.vmem [shape: f32[16,32], index: 0, kind: input, shape index: {}]
  %s1 = inlined_call_operand.vmem [shape: f32[32,384], index: 1, kind: input, shape index: {}]
  %s2 = inlined_call_operand.vmem [shape: f32[128,8], index: 2, kind: input, shape index: {}]
  %s3 = inlined_call_operand.vmem [shape: f32[1,8], index: 3, kind: input, shape index: {}]
  %s4 = inlined_call_operand.vmem [shape: f32[16,8], index: 4, kind: output, shape index: {}]
  %s5 = sld [smem:[#allocation0]]
  $region49: #{tpu_custom_call.1} parent=0
    _
  %s7 = ssub.s32 1, %s5
  %s8 = scalar_select 0, %s7, %s5
  loop: start=0, step=1, limit=4
  $region2: #{tpu_custom_call.1} parent=0 // loop_pre_header
    _
  $region3: #{tpu_custom_call.1} parent=0 // loop_header
    %s10 = sphi 0, %s14
    %p11 = scmp.ge.s32.totalorder %s10, 4
    %s20 = sphi 0, %s22
    %s23 = sphi 0, %s20
    %s24 = sphi 0, %s23
    %s40 = sphi 0, %s24
    %s44 = sphi 0, %s44
    %s46 = sphi 0, %s44
    %s47 = sphi 0, %s46
    %s61 = sphi 0, %s47
    %s65 = sphi 0, %s65
    %s67 = sphi 0, %s65
    %s68 = sphi 0, %s67
    %s82 = sphi 0, %s68
    %s86 = sphi 0, %s86
    %s88 = sphi 0, %s86
    %s89 = sphi 0, %s88
    %s103 = sphi 0, %s89
    %s109 = sphi 0, %s111
    %s112 = sphi 0, %s109
    %s113 = sphi 0, %s112
    %s129 = sphi 0, %s113
  $region4: #{tpu_custom_call.1} parent=0 // loop_header_branch
    %13 = sbr.rel (%p11) target = $region8
  $region5: #{tpu_custom_call.1} parent=0 // loop_body
    %s15 = ssub.s32 %s10, 1
    %s16 = ssub.s32 %s10, 2
    %s17 = sadd.s32 %s10, 1
    %s18 = ssub.s32 %s10, %s17
    %p19 = scmp.eq.s32.totalorder %s18, 0
    %s21 = sadd.s32 %s20, 1
    %s22 = scalar_select %p19, %s20, %s21
    %p25 = pneg %p19
    %p26 = scmp.eq.s32.totalorder %s10, 1
    %p27 = por %p25, %p26
    %p28 = scmp.ne.s32.totalorder %s20, %s23
    %p29 = scmp.eq.s32.totalorder %s10, 0
    %p30 = por %p28, %p29
    %p31 = scmp.ne.s32.totalorder %s20, %s23
    %p32 = scmp.eq.s32.totalorder %s15, 1
    %p33 = por %p31, %p32
    %p34 = scmp.ne.s32.totalorder %s23, %s24
    %p35 = scmp.eq.s32.totalorder %s15, 0
    %p36 = por %p34, %p35
    %p37 = scmp.ne.s32.totalorder %s23, %s24
    %p38 = scmp.eq.s32.totalorder %s16, 1
    %p39 = por %p37, %p38
    %p41 = scmp.ne.s32.totalorder %s24, %s40
    %p42 = scmp.eq.s32.totalorder %s16, 0
    %p43 = por %p41, %p42
    %s45 = sadd.s32 %s44, 1
    %p48 = scmp.eq.s32.totalorder %s10, 1
    %p49 = scmp.ne.s32.totalorder %s44, %s46
    %p50 = scmp.eq.s32.totalorder %s10, 0
    %p51 = por %p49, %p50
    %p52 = scmp.ne.s32.totalorder %s44, %s46
    %p53 = scmp.eq.s32.totalorder %s15, 1
    %p54 = por %p52, %p53
    %p55 = scmp.ne.s32.totalorder %s46, %s47
    %p56 = scmp.eq.s32.totalorder %s15, 0
    %p57 = por %p55, %p56
    %p58 = scmp.ne.s32.totalorder %s46, %s47
    %p59 = scmp.eq.s32.totalorder %s16, 1
    %p60 = por %p58, %p59
    %p62 = scmp.ne.s32.totalorder %s47, %s61
    %p63 = scmp.eq.s32.totalorder %s16, 0
    %p64 = por %p62, %p63
    %s66 = sadd.s32 %s65, 1
    %p69 = scmp.eq.s32.totalorder %s10, 1
    %p70 = scmp.ne.s32.totalorder %s65, %s67
    %p71 = scmp.eq.s32.totalorder %s10, 0
    %p72 = por %p70, %p71
    %p73 = scmp.ne.s32.totalorder %s65, %s67
    %p74 = scmp.eq.s32.totalorder %s15, 1
    %p75 = por %p73, %p74
    %p76 = scmp.ne.s32.totalorder %s67, %s68
    %p77 = scmp.eq.s32.totalorder %s15, 0
    %p78 = por %p76, %p77
    %p79 = scmp.ne.s32.totalorder %s67, %s68
    %p80 = scmp.eq.s32.totalorder %s16, 1
    %p81 = por %p79, %p80
    %p83 = scmp.ne.s32.totalorder %s68, %s82
    %p84 = scmp.eq.s32.totalorder %s16, 0
    %p85 = por %p83, %p84
    %s87 = sadd.s32 %s86, 1
    %p90 = scmp.eq.s32.totalorder %s10, 1
    %p91 = scmp.ne.s32.totalorder %s86, %s88
    %p92 = scmp.eq.s32.totalorder %s10, 0
    %p93 = por %p91, %p92
    %p94 = scmp.ne.s32.totalorder %s86, %s88
    %p95 = scmp.eq.s32.totalorder %s15, 1
    %p96 = por %p94, %p95
    %p97 = scmp.ne.s32.totalorder %s88, %s89
    %p98 = scmp.eq.s32.totalorder %s15, 0
    %p99 = por %p97, %p98
    %p100 = scmp.ne.s32.totalorder %s88, %s89
    %p101 = scmp.eq.s32.totalorder %s16, 1
    %p102 = por %p100, %p101
    %p104 = scmp.ne.s32.totalorder %s89, %s103
    %p105 = scmp.eq.s32.totalorder %s16, 0
    %p106 = por %p104, %p105
    %s107 = ssub.s32 %s10, %s17
    %p108 = scmp.eq.s32.totalorder %s107, 0
    %s110 = sadd.s32 %s109, 1
    %s111 = scalar_select %p108, %s109, %s110
    %p114 = pneg %p108
    %p115 = scmp.eq.s32.totalorder %s10, 1
    %p116 = por %p114, %p115
    %p117 = scmp.ne.s32.totalorder %s109, %s112
    %p118 = scmp.eq.s32.totalorder %s10, 0
    %p119 = por %p117, %p118
    %p120 = scmp.ne.s32.totalorder %s109, %s112
    %p121 = scmp.eq.s32.totalorder %s15, 1
    %p122 = por %p120, %p121
    %p123 = scmp.ne.s32.totalorder %s112, %s113
    %p124 = scmp.eq.s32.totalorder %s15, 0
    %p125 = por %p123, %p124
    %p126 = scmp.ne.s32.totalorder %s112, %s113
    %p127 = scmp.eq.s32.totalorder %s16, 1
    %p128 = por %p126, %p127
    %p130 = scmp.ne.s32.totalorder %s113, %s129
    %p131 = scmp.eq.s32.totalorder %s16, 0
    %p132 = por %p130, %p131
    %p133 = scmp.le.s32.totalorder 1, %s10
    %p134 = scmp.lt.s32.totalorder %s10, 3
    %p135 = pnand %p133, %p134
    %p136 = pneg %p135
    // Predicated region
    $region9: #{tpu_custom_call.1} parent=5 // pred_check
      _
    $region10: #{tpu_custom_call.1} parent=5 // pred_check_branch
      %138 = sbr.rel (%p135) target = $region12
    $region11: #{tpu_custom_call.1} parent=5 // pred_region
      %s139 = ssub.s32 %s10, 1
      // Predicated region
      $region13: #{tpu_custom_call.1} parent=11 // pred_check
        %p140 = pneg %p57
      $region14: #{tpu_custom_call.1} parent=11 // pred_check_branch
        %142 = sbr.rel (%p140) target = $region16
      $region15: #{tpu_custom_call.1} parent=11 // pred_region
        _
      $region16: #{tpu_custom_call.1} parent=11 // pred_fallthru
        _
      // Predicated region
      $region17: #{tpu_custom_call.1} parent=11 // pred_check
        %p143 = pneg %p78
      $region18: #{tpu_custom_call.1} parent=11 // pred_check_branch
        %145 = sbr.rel (%p143) target = $region20
      $region19: #{tpu_custom_call.1} parent=11 // pred_region
        _
      $region20: #{tpu_custom_call.1} parent=11 // pred_fallthru
        _
      // Predicated region
      $region21: #{tpu_custom_call.1} parent=11 // pred_check
        %p146 = pneg %p99
      $region22: #{tpu_custom_call.1} parent=11 // pred_check_branch
        %148 = sbr.rel (%p146) target = $region24
      $region23: #{tpu_custom_call.1} parent=11 // pred_region
        _
      $region24: #{tpu_custom_call.1} parent=11 // pred_fallthru
        _
    $region12: #{tpu_custom_call.1} parent=5 // pred_fallthru
      _
    %p149 = scmp.lt.s32.totalorder %s10, 2
    // Predicated region
    $region25: #{tpu_custom_call.1} parent=5 // pred_check
      %p150 = pneg %p149
    $region26: #{tpu_custom_call.1} parent=5 // pred_check_branch
      %152 = sbr.rel (%p150) target = $region28
    $region27: #{tpu_custom_call.1} parent=5 // pred_region
      // Predicated region
      $region29: #{tpu_custom_call.1} parent=27 // pred_check
        %p153 = pneg %p30
      $region30: #{tpu_custom_call.1} parent=27 // pred_check_branch
        %155 = sbr.rel (%p153) target = $region32
      $region31: #{tpu_custom_call.1} parent=27 // pred_region
        %p156 = scmp.lt.s32.totalorder %s10, 1
        %s157 = scalar_select %p156, %s10, 1
        %s158 = smul.addr %s157, 8
        %s159 = scalar_lea.vmem %s0, %s158
      $region32: #{tpu_custom_call.1} parent=27 // pred_fallthru
        _
    $region28: #{tpu_custom_call.1} parent=5 // pred_fallthru
      _
    %p160 = scmp.le.s32.totalorder 1, %s10
    %p161 = scmp.lt.s32.totalorder %s10, 3
    %p162 = pnand %p160, %p161
    %p163 = pneg %p162
    // Predicated region
    $region33: #{tpu_custom_call.1} parent=5 // pred_check
      _
    $region34: #{tpu_custom_call.1} parent=5 // pred_check_branch
      %165 = sbr.rel (%p162) target = $region36
    $region35: #{tpu_custom_call.1} parent=5 // pred_region
      %s166 = ssub.s32 %s10, 1
      %p167 = scmp.lt.s32.totalorder %s15, 1
      %s168 = scalar_select %p167, %s15, 1
      %s169 = smul.addr %s168, 8
      %s170 = scalar_lea.vmem %s0, %s169
      %p171 = pneg %p36
      %p172 = pneg %p33
      %p173 = pneg %p57
      %p174 = pneg %p54
      %p175 = pneg %p78
      %p176 = pneg %p75
      %p177 = pneg %p99
      %p178 = pneg %p96
      %p179 = pneg %p125
      %p180 = pneg %p122
      %p181 = scmp.lt.s32.totalorder %s15, 1
      %s182 = scalar_select %p181, %s15, 1
      %s183 = smul.addr %s182, 8
      %s184 = scalar_lea.vmem %s4, %s183
      %p185 = scmp.lt.s32.totalorder %s15, 1
      %s186 = scalar_select %p185, %s15, 1
      %s187 = smul.addr %s186, 8
      %s188 = scalar_lea.vmem %s0, %s187
      %p189 = scmp.lt.s32.totalorder %s15, 1
      %s190 = scalar_select %p189, %s15, 1
      %s191 = smul.addr %s190, 8
      %s192 = scalar_lea.vmem %s4, %s191
      %v193 = vld [vmem:[%s188] sm:$0xff]
      %v194 = vld [vmem:[%s1] sm:$0xff]
      %v195 = vld [vmem:[%s1 + $0x8] sm:$0xff]
      %v196 = vld [vmem:[%s1 + $0x10] sm:$0xff]
      %v197 = vld [vmem:[%s1 + $0x18] sm:$0xff]
      %v198 = vld [vmem:[%s1 + $0x20] sm:$0xff]
      %v199 = vld [vmem:[%s1 + $0x28] sm:$0xff]
      %v200 = vld [vmem:[%s1 + $0x30] sm:$0xff]
      %v201 = vld [vmem:[%s1 + $0x38] sm:$0xff]
      %v202 = vld [vmem:[%s1 + $0x40] sm:$0xff]
      %v203 = vld [vmem:[%s1 + $0x48] sm:$0xff]
      %v204 = vld [vmem:[%s1 + $0x50] sm:$0xff]
      %v205 = vld [vmem:[%s1 + $0x58] sm:$0xff]
      %vm206 = vcmask 261120
      %v208 = vsel %vm206, %v193, 0
      %210 = vmatprep.subr.mxu0 0.0
      %211 = vmatpush1.msra.mxu0 0.0
      %212 = vmatprep.subr.mxu0 0.0
      %213 = vmatpush1.msra.mxu0 0.0
      %214 = vmatprep.subr.mxu0 0.0
      %215 = vmatpush1.msra.mxu0 0.0
      %216 = vmatprep.subr.mxu0 0.0
      %217 = vmatpush1.msra.mxu0 0.0
      %218 = vmatprep.subr.mxu0 0.0
      %219 = vmatpush1.msra.mxu0 0.0
      %220 = vmatprep.subr.mxu0 0.0
      %221 = vmatpush1.msra.mxu0 0.0
      %222 = vmatprep.subr.mxu0 0.0
      %223 = vmatpush1.msra.mxu0 0.0
      %224 = vmatprep.subr.mxu0 0.0
      %225 = vmatpush1.msra.mxu0 0.0
      %226 = vmatprep.subr.mxu0 0.0
      %227 = vmatpush1.msra.mxu0 0.0
      %228 = vmatprep.subr.mxu0 0.0
      %229 = vmatpush1.msra.mxu0 0.0
      %230 = vmatprep.subr.mxu0 0.0
      %231 = vmatpush1.msra.mxu0 0.0
      %232 = vmatprep.subr.mxu0 0.0
      %233 = vmatpush1.msra.mxu0 0.0
      %234 = vmatprep.subr.mxu0 %v204
      %235 = vmatpush1.msra.mxu0 %v203
      %236 = vmatprep.subr.mxu0 %v201
      %237 = vmatpush1.msra.mxu0 %v200
      %238 = vmatprep.subr.mxu0 %v198
      %239 = vmatpush1.msra.mxu0 %v197
      %240 = vmatprep.subr.mxu0 %v195
      %241 = vmatpush1.msra.mxu0 %v194
      %242 = vmatprep.subr.mxu0 0.0
      %243 = vmatpush2.msra.mxu0 0.0
      %244 = vmatprep.subr.mxu0 0.0
      %245 = vmatpush2.msra.mxu0 0.0
      %246 = vmatprep.subr.mxu0 0.0
      %247 = vmatpush2.msra.mxu0 0.0
      %248 = vmatprep.subr.mxu0 0.0
      %249 = vmatpush2.msra.mxu0 0.0
      %250 = vmatprep.subr.mxu0 0.0
      %251 = vmatpush2.msra.mxu0 0.0
      %252 = vmatprep.subr.mxu0 0.0
      %253 = vmatpush2.msra.mxu0 0.0
      %254 = vmatprep.subr.mxu0 0.0
      %255 = vmatpush2.msra.mxu0 0.0
      %256 = vmatprep.subr.mxu0 0.0
      %257 = vmatpush2.msra.mxu0 0.0
      %258 = vmatprep.subr.mxu0 0.0
      %259 = vmatpush2.msra.mxu0 0.0
      %260 = vmatprep.subr.mxu0 0.0
      %261 = vmatpush2.msra.mxu0 0.0
      %262 = vmatprep.subr.mxu0 0.0
      %263 = vmatpush2.msra.mxu0 0.0
      %264 = vmatprep.subr.mxu0 0.0
      %265 = vmatpush2.msra.mxu0 0.0
      %266 = vmatprep.subr.mxu0 0.0
      %267 = vmatpush2.msra.mxu0 0.0
      %268 = vmatprep.subr.mxu0 0.0
      %269 = vmatpush2.msra.mxu0 0.0
      %270 = vmatprep.subr.mxu0 0.0
      %271 = vmatpush2.msra.mxu0 0.0
      %272 = vmatprep.subr.mxu0 0.0
      %273 = vmatpush2.msra.mxu0 0.0
      %274 = vmatprep.mubr.f32.mxu0 0.0
      %275 = vmatmul.mubr.f32.gmra.mxu0 %v208
      %v276 = vpop.f32.mrf.mxu0
      %v277 = vadd.f32 0.0, %v276
      %v278 = vpop.f32.mrf.mxu0
      %v279 = vadd.f32 0.0, %v278
      %280 = vdwg.mxu0
      %281 = vmatprep.subr.mxu0 0.0
      %282 = vmatpush1.msra.mxu0 0.0
      %283 = vmatprep.subr.mxu0 0.0
      %284 = vmatpush1.msra.mxu0 0.0
      %285 = vmatprep.subr.mxu0 0.0
      %286 = vmatpush1.msra.mxu0 0.0
      %287 = vmatprep.subr.mxu0 0.0
      %288 = vmatpush1.msra.mxu0 0.0
      %289 = vmatprep.subr.mxu0 0.0
      %290 = vmatpush1.msra.mxu0 0.0
      %291 = vmatprep.subr.mxu0 0.0
      %292 = vmatpush1.msra.mxu0 0.0
      %293 = vmatprep.subr.mxu0 0.0
      %294 = vmatpush1.msra.mxu0 0.0
      %295 = vmatprep.subr.mxu0 0.0
      %296 = vmatpush1.msra.mxu0 0.0
      %297 = vmatprep.subr.mxu0 0.0
      %298 = vmatpush1.msra.mxu0 0.0
      %299 = vmatprep.subr.mxu0 0.0
      %300 = vmatpush1.msra.mxu0 0.0
      %301 = vmatprep.subr.mxu0 0.0
      %302 = vmatpush1.msra.mxu0 0.0
      %303 = vmatprep.subr.mxu0 0.0
      %304 = vmatpush1.msra.mxu0 0.0
      %305 = vmatprep.subr.mxu0 0.0
      %306 = vmatpush1.msra.mxu0 %v205
      %307 = vmatprep.subr.mxu0 0.0
      %308 = vmatpush1.msra.mxu0 %v202
      %309 = vmatprep.subr.mxu0 0.0
      %310 = vmatpush1.msra.mxu0 %v199
      %311 = vmatprep.subr.mxu0 0.0
      %312 = vmatpush1.msra.mxu0 %v196
      %313 = vmatprep.subr.mxu0 0.0
      %314 = vmatpush2.msra.mxu0 0.0
      %315 = vmatprep.subr.mxu0 0.0
      %316 = vmatpush2.msra.mxu0 0.0
      %317 = vmatprep.subr.mxu0 0.0
      %318 = vmatpush2.msra.mxu0 0.0
      %319 = vmatprep.subr.mxu0 0.0
      %320 = vmatpush2.msra.mxu0 0.0
      %321 = vmatprep.subr.mxu0 0.0
      %322 = vmatpush2.msra.mxu0 0.0
      %323 = vmatprep.subr.mxu0 0.0
      %324 = vmatpush2.msra.mxu0 0.0
      %325 = vmatprep.subr.mxu0 0.0
      %326 = vmatpush2.msra.mxu0 0.0
      %327 = vmatprep.subr.mxu0 0.0
      %328 = vmatpush2.msra.mxu0 0.0
      %329 = vmatprep.subr.mxu0 0.0
      %330 = vmatpush2.msra.mxu0 0.0
      %331 = vmatprep.subr.mxu0 0.0
      %332 = vmatpush2.msra.mxu0 0.0
      %333 = vmatprep.subr.mxu0 0.0
      %334 = vmatpush2.msra.mxu0 0.0
      %335 = vmatprep.subr.mxu0 0.0
      %336 = vmatpush2.msra.mxu0 0.0
      %337 = vmatprep.subr.mxu0 0.0
      %338 = vmatpush2.msra.mxu0 0.0
      %339 = vmatprep.subr.mxu0 0.0
      %340 = vmatpush2.msra.mxu0 0.0
      %341 = vmatprep.subr.mxu0 0.0
      %342 = vmatpush2.msra.mxu0 0.0
      %343 = vmatprep.subr.mxu0 0.0
      %344 = vmatpush2.msra.mxu0 0.0
      %345 = vmatprep.mubr.f32.mxu0 0.0
      %346 = vmatmul.mubr.f32.gmra.mxu0 %v208
      %v347 = vpop.f32.mrf.mxu0
      %v348 = vadd.f32 0.0, %v347
      %v349 = vpop.f32.mrf.mxu0
      %350 = vdwg.mxu0
      %v351 = vadd.f32 %v279, 1.0
      %v352 = vmul.f32 %v277, %v351
      %v353 = vadd.f32 %v348, 1.0
      %v354 = vmul.f32 %v352, %v353
      %v355 = vld [vmem:[%s2] sm:$0xff]
      %v356 = vld [vmem:[%s2 + $0x8] sm:$0xff]
      %v357 = vld [vmem:[%s2 + $0x10] sm:$0xff]
      %v358 = vld [vmem:[%s2 + $0x18] sm:$0xff]
      %v359 = vld [vmem:[%s2 + $0x20] sm:$0xff]
      %v360 = vld [vmem:[%s2 + $0x28] sm:$0xff]
      %v361 = vld [vmem:[%s2 + $0x30] sm:$0xff]
      %v362 = vld [vmem:[%s2 + $0x38] sm:$0xff]
      %v363 = vld [vmem:[%s2 + $0x40] sm:$0xff]
      %v364 = vld [vmem:[%s2 + $0x48] sm:$0xff]
      %v365 = vld [vmem:[%s2 + $0x50] sm:$0xff]
      %v366 = vld [vmem:[%s2 + $0x58] sm:$0xff]
      %v367 = vld [vmem:[%s2 + $0x60] sm:$0xff]
      %v368 = vld [vmem:[%s2 + $0x68] sm:$0xff]
      %v369 = vld [vmem:[%s2 + $0x70] sm:$0xff]
      %v370 = vld [vmem:[%s2 + $0x78] sm:$0xff]
      %v371 = vld [vmem:[%s3] sm:$0x1]
      %v373 = vlaneseq
      %v374 = vshrl.u32 %v373, 7
      %v375 = vsub.s32 0, %v374
      %v376 = vrot.slane %v371, %v375
      %378 = vmatprep.subr.mxu0 0.0
      %379 = vmatpush1.msra.mxu0 %v370
      %380 = vmatprep.subr.mxu0 0.0
      %381 = vmatpush1.msra.mxu0 %v369
      %382 = vmatprep.subr.mxu0 0.0
      %383 = vmatpush1.msra.mxu0 %v368
      %384 = vmatprep.subr.mxu0 0.0
      %385 = vmatpush1.msra.mxu0 %v367
      %386 = vmatprep.subr.mxu0 0.0
      %387 = vmatpush1.msra.mxu0 %v366
      %388 = vmatprep.subr.mxu0 0.0
      %389 = vmatpush1.msra.mxu0 %v365
      %390 = vmatprep.subr.mxu0 0.0
      %391 = vmatpush1.msra.mxu0 %v364
      %392 = vmatprep.subr.mxu0 0.0
      %393 = vmatpush1.msra.mxu0 %v363
      %394 = vmatprep.subr.mxu0 0.0
      %395 = vmatpush1.msra.mxu0 %v362
      %396 = vmatprep.subr.mxu0 0.0
      %397 = vmatpush1.msra.mxu0 %v361
      %398 = vmatprep.subr.mxu0 0.0
      %399 = vmatpush1.msra.mxu0 %v360
      %400 = vmatprep.subr.mxu0 0.0
      %401 = vmatpush1.msra.mxu0 %v359
      %402 = vmatprep.subr.mxu0 0.0
      %403 = vmatpush1.msra.mxu0 %v358
      %404 = vmatprep.subr.mxu0 0.0
      %405 = vmatpush1.msra.mxu0 %v357
      %406 = vmatprep.subr.mxu0 0.0
      %407 = vmatpush1.msra.mxu0 %v356
      %408 = vmatprep.subr.mxu0 0.0
      %409 = vmatpush1.msra.mxu0 %v355
      %410 = vmatprep.subr.mxu0 0.0
      %411 = vmatpush2.msra.mxu0 0.0
      %412 = vmatprep.subr.mxu0 0.0
      %413 = vmatpush2.msra.mxu0 0.0
      %414 = vmatprep.subr.mxu0 0.0
      %415 = vmatpush2.msra.mxu0 0.0
      %416 = vmatprep.subr.mxu0 0.0
      %417 = vmatpush2.msra.mxu0 0.0
      %418 = vmatprep.subr.mxu0 0.0
      %419 = vmatpush2.msra.mxu0 0.0
      %420 = vmatprep.subr.mxu0 0.0
      %421 = vmatpush2.msra.mxu0 0.0
      %422 = vmatprep.subr.mxu0 0.0
      %423 = vmatpush2.msra.mxu0 0.0
      %424 = vmatprep.subr.mxu0 0.0
      %425 = vmatpush2.msra.mxu0 0.0
      %426 = vmatprep.subr.mxu0 0.0
      %427 = vmatpush2.msra.mxu0 0.0
      %428 = vmatprep.subr.mxu0 0.0
      %429 = vmatpush2.msra.mxu0 0.0
      %430 = vmatprep.subr.mxu0 0.0
      %431 = vmatpush2.msra.mxu0 0.0
      %432 = vmatprep.subr.mxu0 0.0
      %433 = vmatpush2.msra.mxu0 0.0
      %434 = vmatprep.subr.mxu0 0.0
      %435 = vmatpush2.msra.mxu0 0.0
      %436 = vmatprep.subr.mxu0 0.0
      %437 = vmatpush2.msra.mxu0 0.0
      %438 = vmatprep.subr.mxu0 0.0
      %439 = vmatpush2.msra.mxu0 0.0
      %440 = vmatprep.subr.mxu0 0.0
      %441 = vmatpush2.msra.mxu0 0.0
      %442 = vmatprep.mubr.f32.mxu0 0.0
      %443 = vmatmul.mubr.f32.gmra.mxu0 %v354
      %v444 = vpop.f32.mrf.mxu0
      %v445 = vadd.f32 %v376, %v444
      %v446 = vpop.f32.mrf.mxu0
      %447 = vdwg.mxu0
      %vm448 = vcmask 64512
      %449 = vst.msk [vmem:[%s192] sm:$0xff] %vm448, %v445
      %p450 = scmp.lt.s32.totalorder %s15, 1
      %s451 = scalar_select %p450, %s15, 1
      %s452 = smul.addr %s451, 8
      %s453 = scalar_lea.vmem %s4, %s452
      // Predicated region
      $region37: #{tpu_custom_call.1} parent=35 // pred_check
        %p454 = pneg %p122
      $region38: #{tpu_custom_call.1} parent=35 // pred_check_branch
        %456 = sbr.rel (%p454) target = $region40
      $region39: #{tpu_custom_call.1} parent=35 // pred_region
        _
      $region40: #{tpu_custom_call.1} parent=35 // pred_fallthru
        _
    $region36: #{tpu_custom_call.1} parent=5 // pred_fallthru
      _
    %p457 = scmp.le.s32.totalorder 2, %s10
    // Predicated region
    $region41: #{tpu_custom_call.1} parent=5 // pred_check
      %p458 = pneg %p457
    $region42: #{tpu_custom_call.1} parent=5 // pred_check_branch
      %460 = sbr.rel (%p458) target = $region44
    $region43: #{tpu_custom_call.1} parent=5 // pred_region
      %s461 = ssub.s32 %s10, 2
      // Predicated region
      $region45: #{tpu_custom_call.1} parent=43 // pred_check
        %p462 = pneg %p128
      $region46: #{tpu_custom_call.1} parent=43 // pred_check_branch
        %464 = sbr.rel (%p462) target = $region48
      $region47: #{tpu_custom_call.1} parent=43 // pred_region
        %p465 = scmp.lt.s32.totalorder %s16, 1
        %s466 = scalar_select %p465, %s16, 1
        %s467 = smul.addr %s466, 8
        %s468 = scalar_lea.vmem %s4, %s467
      $region48: #{tpu_custom_call.1} parent=43 // pred_fallthru
        _
    $region44: #{tpu_custom_call.1} parent=5 // pred_fallthru
      _
  $region6: #{tpu_custom_call.1} parent=0 // loop_footer
    %s14 = sadd.s32 1, %s10
  $region7: #{tpu_custom_call.1} parent=0 // loop_footer_branch
    %9 = sbr.rel target = $region3
  $region8: #{tpu_custom_call.1} parent=0 // loop_exit
    _

</llo_original>
